<compile_context>
chip_gen: v7x
topology: tpu7x:2x2x1
jax: 0.10.0
libtpu: 0.0.40
codegen_flags: <defaults>
</compile_context>

<pallas_src>
import functools
import math

import numpy as np
import jax
import jax.numpy as jnp
from jax.experimental import pallas as pl
from jax.experimental.pallas import tpu as pltpu

EPS = 1e-5


# ----------------------------------------------------------------------------
# One-shot probe of pltpu.roll's rotation direction (trace-time constant).
# pltpu.roll is expected to match jnp.roll (out[i] = x[(i - shift) % N]); the
# probe makes the tap-shift computation robust to either convention.
# ----------------------------------------------------------------------------
_ROLL_LIKE_JNP = None


def _roll_like_jnp():
    global _ROLL_LIKE_JNP
    if _ROLL_LIKE_JNP is None:
        def probe(x_ref, o_ref):
            o_ref[...] = pltpu.roll(x_ref[...], 1, 1)

        x = jnp.broadcast_to(jnp.arange(128, dtype=jnp.float32), (8, 128))
        y = pl.pallas_call(
            probe, out_shape=jax.ShapeDtypeStruct((8, 128), jnp.float32))(x)
        _ROLL_LIKE_JNP = bool(np.asarray(y)[0, 0] == 127.0)
    return _ROLL_LIKE_JNP


def _tap_shifts(H, W, roll_like_jnp):
    """Static roll amounts so that tap t reads h[p + dy*W + dx] at position p."""
    HW = H * W
    shifts = []
    for dy in (-1, 0, 1):
        for dx in (-1, 0, 1):
            s = dy * W + dx
            shifts.append(((-s) % HW) if roll_like_jnp else (s % HW))
    return tuple(shifts)


def _tap_masks(H, W):
    """(9, H*W) 0/1 masks: position p is valid for tap (dy,dx) iff the source
    pixel (y+dy, x+dx) is inside the image (kills roll wrap-around)."""
    yy, xx = np.divmod(np.arange(H * W), W)
    rows = []
    for dy in (-1, 0, 1):
        for dx in (-1, 0, 1):
            valid = ((yy + dy >= 0) & (yy + dy < H) &
                     (xx + dx >= 0) & (xx + dx < W))
            rows.append(valid.astype(np.float32))
    return jnp.asarray(np.stack(rows))


# ----------------------------------------------------------------------------
# Fused kernel: GroupNorm(groups==C) + SiLU + 3x3 'same' conv + bias
#               [+ residual], one batch tile per grid step.
# ----------------------------------------------------------------------------
def fused_gn_silu_conv3x3_kernel(x_ref, gnw_ref, gnb_ref, w9_ref, cb_ref,
                                 mask_ref, o_ref, *, shifts, c_out,
                                 add_residual):
    """Blocks:
      x_ref    : (BT, C, H*W)     input (NCHW with spatial flattened)
      gnw/gnb  : (1, C, 1)        GroupNorm affine params
      w9_ref   : (9*Cout, C)      conv weights, tap-major, bf16
      cb_ref   : (1, Cout, 1)     conv bias
      mask_ref : (9, H*W)         per-tap boundary-validity masks (0/1)
      o_ref    : (BT, Cout, H*W)  output
    """
    bt, c_in, hw = x_ref.shape

    # --- GroupNorm (num_groups == num_channels): per-(b, c) stats, two-pass
    #     centered variance (avoids E[x^2]-mean^2 cancellation).  All f32.
    x = x_ref[...].astype(jnp.float32)                       # (BT, C, HW)
    mean = jnp.mean(x, axis=-1, keepdims=True)               # (BT, C, 1)
    xc = x - mean
    var = jnp.mean(xc * xc, axis=-1, keepdims=True)
    xn = xc * jax.lax.rsqrt(var + EPS)
    xn = xn * gnw_ref[...] + gnb_ref[...]                    # affine
    h = xn * jax.nn.sigmoid(xn)                              # SiLU (EUP)
    # dropout(p=0.0) is the identity.
    # TODO(synk): dropout with p > 0 (training-mode RNG mask) not implemented.

    # --- 3x3 'same' conv as 9 accumulated shifted-tap matmuls.
    #     The activation is rolled along the flattened spatial axis (XLU)
    #     instead of materializing an im2col scratch; boundary wrap-around is
    #     zeroed by the precomputed masks.  Operands are cast to bf16 at the
    #     MXU; accumulation stays f32.
    h2 = h.reshape(bt * c_in, hw)                            # rows = (b, c)
    w9 = w9_ref[...]                                         # (9*Cout, C) bf16
    acc = jnp.zeros((bt, c_out, hw), jnp.float32)
    for t, shift in enumerate(shifts):
        tap = h2 if shift == 0 else pltpu.roll(h2, shift, 1)
        if t != 4:                                           # center mask == 1
            tap = tap * mask_ref[t:t + 1, :]
        tap = tap.astype(jnp.bfloat16).reshape(bt, c_in, hw)
        # Tiny (Cout, C) weight slab broadcast over the batch tile so each tap
        # is a single batched MXU contraction (no per-batch Python matmuls).
        w_t = jnp.broadcast_to(w9[t * c_out:(t + 1) * c_out, :],
                               (bt, c_out, c_in))
        acc = acc + jnp.einsum("boc,bch->boh", w_t, tap,
                               preferred_element_type=jnp.float32)

    out = acc + cb_ref[...]                                  # conv bias
    if add_residual:
        out = out + x_ref[...].astype(jnp.float32)           # residual: re-read
    o_ref[...] = out.astype(o_ref.dtype)


def fused_gn_silu_conv3x3(x2, gnw, gnb, w9, cb, masks, *, shifts,
                          add_residual, batch_tile=None):
    """x2: (B, C, H*W).  Returns (B, Cout, H*W)."""
    B, C, HW = x2.shape
    Cout = cb.shape[1]
    BT = B if batch_tile is None else batch_tile
    assert B % BT == 0
    # NOTE: at production sizes (large C / H*W) add an H*W (lane) tile axis
    # with a one-row halo and shrink BT so each v7x TensorCore gets >=2
    # pipelined steps; re-derive vmem_limit_bytes per generation.
    kern = functools.partial(fused_gn_silu_conv3x3_kernel,
                             shifts=tuple(shifts), c_out=Cout,
                             add_residual=add_residual)
    return pl.pallas_call(
        kern,
        out_shape=jax.ShapeDtypeStruct((B, Cout, HW), x2.dtype),
        grid=(B // BT,),
        in_specs=[
            pl.BlockSpec((BT, C, HW), lambda i: (i, 0, 0)),
            pl.BlockSpec((1, C, 1), lambda i: (0, 0, 0)),
            pl.BlockSpec((1, C, 1), lambda i: (0, 0, 0)),
            pl.BlockSpec((9 * Cout, C), lambda i: (0, 0)),
            pl.BlockSpec((1, Cout, 1), lambda i: (0, 0, 0)),
            pl.BlockSpec((9, HW), lambda i: (0, 0)),
        ],
        out_specs=pl.BlockSpec((BT, Cout, HW), lambda i: (i, 0, 0)),
        compiler_params=pltpu.CompilerParams(
            dimension_semantics=("parallel",),
            # Explicit scoped-VMEM budget (tiny shapes need <1 MiB; leave
            # headroom under 64 MiB physical on v7x, 128 MiB on v5e/v6e).
            vmem_limit_bytes=32 * 1024 * 1024),
    )(x2, gnw, gnb, w9, cb, masks)


# ----------------------------------------------------------------------------
# One-time parameter prep (outside the forward): weight layout + bf16 cast.
# ----------------------------------------------------------------------------
def prepare_kernel_params(p, H, W):
    C = p["gn2_w"].shape[0]
    Cout = p["conv2_b"].shape[0]
    # HWIO (3,3,Cin,Cout) -> tap-major (9*Cout, Cin), cast to bf16 for the MXU.
    w9 = jnp.transpose(p["conv2_w"], (0, 1, 3, 2)).reshape(9 * Cout, C)
    return dict(
        w9=w9.astype(jnp.bfloat16),
        cb=p["conv2_b"].reshape(1, Cout, 1).astype(jnp.float32),
        gnw=p["gn2_w"].reshape(1, C, 1).astype(jnp.float32),
        gnb=p["gn2_b"].reshape(1, C, 1).astype(jnp.float32),
        masks=_tap_masks(H, W),
        shifts=_tap_shifts(H, W, _roll_like_jnp()),
    )


# ----------------------------------------------------------------------------
# ResnetBlock forward (NCHW in / NCHW out, matching the literal PyTorch code)
# ----------------------------------------------------------------------------
def resnet_block_forward(x_nchw, te, kparams):
    # `te`, gnorm1, conv1 and the time MLP cannot affect the returned value:
    # the reference forward overwrites y with the gnorm2/conv2 branch.
    del te
    B, C, H, W = x_nchw.shape
    Cout = kparams["cb"].shape[1]
    assert Cout == C, "module forward only type-checks when Cout == Cin"

    x2 = x_nchw.reshape(B, C, H * W)                     # free reshape (NCHW)
    y2 = fused_gn_silu_conv3x3(
        x2, kparams["gnw"], kparams["gnb"], kparams["w9"], kparams["cb"],
        kparams["masks"], shifts=kparams["shifts"], add_residual=True)
    return y2.reshape(B, Cout, H, W)                     # free reshape (NCHW)


# ----------------------------------------------------------------------------
# Deterministic parameter init (shapes from ResnetBlock.__init__)
# ----------------------------------------------------------------------------
def init_params(key, C, E, Cout):
    ks = jax.random.split(key, 12)

    def rnd(k, shape, scale):
        return (scale * jax.random.normal(k, shape)).astype(jnp.float32)

    return dict(
        gn1_w=(1.0 + rnd(ks[0], (C,), 0.1)),
        gn1_b=rnd(ks[1], (C,), 0.1),
        conv1_w=rnd(ks[2], (3, 3, C, Cout), 1.0 / math.sqrt(9 * C)),   # HWIO
        conv1_b=rnd(ks[3], (Cout,), 0.05),
        gn2_w=(1.0 + rnd(ks[4], (Cout,), 0.1)),
        gn2_b=rnd(ks[5], (Cout,), 0.1),
        conv2_w=rnd(ks[6], (3, 3, Cout, Cout), 1.0 / math.sqrt(9 * Cout)),
        conv2_b=rnd(ks[7], (Cout,), 0.05),
        t_w1=rnd(ks[8], (E, 4 * E), 1.0 / math.sqrt(E)),
        t_b1=jnp.zeros((1, 4 * E), jnp.float32),
        t_w2=rnd(ks[9], (4 * E, 4 * E), 1.0 / math.sqrt(4 * E)),
        t_b2=jnp.zeros((1, 4 * E), jnp.float32),
        t_w3=rnd(ks[10], (4 * E, Cout), 1.0 / math.sqrt(4 * E)),
        t_b3=rnd(ks[11], (1, Cout), 0.05),
    )


# ----------------------------------------------------------------------------
# Pure-JAX reference: mirrors the FULL PyTorch forward (dead branch included)
# ----------------------------------------------------------------------------
def ref_forward(x_nchw, te, p):
    def gn(x, w, b):
        mean = x.mean(axis=(2, 3), keepdims=True)
        var = jnp.square(x - mean).mean(axis=(2, 3), keepdims=True)
        xn = (x - mean) / jnp.sqrt(var + EPS)
        return xn * w[None, :, None, None] + b[None, :, None, None]

    def silu(v):
        return v * jax.nn.sigmoid(v)

    def conv(x, w_hwio, b):
        xn = jnp.transpose(x, (0, 2, 3, 1))
        y = jax.lax.conv_general_dilated(
            xn, w_hwio, (1, 1), "SAME",
            dimension_numbers=("NHWC", "HWIO", "NHWC"))
        return jnp.transpose(y + b, (0, 3, 1, 2))

    h = silu(te @ p["t_w1"] + p["t_b1"])
    h = silu(h @ p["t_w2"] + p["t_b2"])
    tvec = h @ p["t_w3"] + p["t_b3"]                       # (B, Cout)

    y = conv(silu(gn(x_nchw, p["gn1_w"], p["gn1_b"])), p["conv1_w"], p["conv1_b"])
    y = y + tvec[:, :, None, None]
    # reference forward overwrites y from x (discarding the above):
    y = conv(silu(gn(x_nchw, p["gn2_w"], p["gn2_b"])), p["conv2_w"], p["conv2_b"])
    y = y + x_nchw                                         # has_residual_connection
    return y


# ----------------------------------------------------------------------------
if __name__ == "__main__":
    key = jax.random.PRNGKey(0)
    B, C, H, W, E = 2, 4, 16, 16, 8
    Cout = C  # output_channels=None -> has_residual_connection=True

    kx, kt, kp = jax.random.split(key, 3)
    x = jax.random.normal(kx, (B, C, H, W), jnp.float32)   # NCHW like PyTorch
    te = jax.random.normal(kt, (B, E), jnp.float32)
    params = init_params(kp, C, E, Cout)
    kernel_params = prepare_kernel_params(params, H, W)    # one-time prep

    out = resnet_block_forward(x, te, kernel_params)
    out = jax.block_until_ready(out)

    ref = ref_forward(x, te, params)
    # bf16 MXU operands -> ~1e-2-scale differences vs. the f32 reference.
    np.testing.assert_allclose(np.asarray(out), np.asarray(ref),
                               rtol=5e-2, atol=5e-2)
    print("KERNEL_OK")
</pallas_src>

<mosaic_0001>
module attributes {stable_mosaic.version = 11 : i64} {
  func.func @probe(%arg0: memref<8x128xf32, #tpu.memory_space<vmem>>, %arg1: memref<8x128xf32, #tpu.memory_space<vmem>>) attributes {dimension_semantics = [], scalar_prefetch = 0 : i64, scratch_operands = 0 : i64, tpu.core_type = #tpu.core_type<tc>} {
    %c0 = arith.constant 0 : index
    %c0_0 = arith.constant 0 : index
    %0 = vector.load %arg0[%c0, %c0_0] : memref<8x128xf32, #tpu.memory_space<vmem>>, vector<8x128xf32>
    %c1_i32 = arith.constant 1 : i32
    %1 = tpu.dynamic_rotate %0 by %c1_i32 dim 1 : vector<8x128xf32>, i32 -> vector<8x128xf32>
    %c0_1 = arith.constant 0 : index
    %c0_2 = arith.constant 0 : index
    %2 = vector.load %arg1[%c0_1, %c0_2] : memref<8x128xf32, #tpu.memory_space<vmem>>, vector<8x128xf32>
    tpu.vector_store %arg1[%c0_1, %c0_2], %1 {strides = array<i32>} : memref<8x128xf32, #tpu.memory_space<vmem>>, vector<8x128xf32>,
    return
  }
}

</mosaic_0001>

<llo_original>
// kernel: tpu_custom_call.1
$region0: #{tpu_custom_call.1}
  #allocation0 [shape = 'u32[]', space=smem, size = 0x4, offset = 0x4, fixed_abs, tag = 'smem constant byte address 0x4 - core index']
  #allocation1 [shape = 'u32[144,128]{1,0:T(1,128)}', space=vmem, size = 0x12000, scoped, tag = 'internal scratch']
  %s0 = inlined_call_operand.hbm [shape: f32[8,128], index: 0, kind: input, shape index: {}]
  %s1 = inlined_call_operand.hbm [shape: f32[8,128], index: 1, kind: output, shape index: {}]
  %s2 = sld [smem:[#allocation0]]
  $region18: #{tpu_custom_call.1} parent=0
    _
  %s4 = ssub.s32 1, %s2
  %s5 = scalar_select 0, %s4, %s2
  $region1: #{tpu_custom_call.1} parent=0
    #allocation2 [shape = 'u8[4096]{0}', space=vmem, size = 0x1000, scoped, tag = 'input window, operand 0, single buffered']
    #allocation3 [shape = 's32[1]{0}', space=sflag, size = 0x4, scoped, tag = 'scoped memory for tpu_custom_call.1']
    #allocation4 [shape = 's32[1]{0}', space=sflag, size = 0x4, scoped, tag = 'scoped memory for tpu_custom_call.1']
    #allocation5 [shape = 'u8[4096]{0}', space=vmem, size = 0x1000, scoped, tag = 'output window, operand 0, single buffered']
    %6 = vsyncpa [#allocation3], 0
    %7 = vsyncpa [#allocation4], 0
    // Predicated region
    $region2: #{tpu_custom_call.1} parent=1 // pred_check
      _
    $region3: #{tpu_custom_call.1} parent=1 // pred_check_branch
      %9 = sbr.rel (0) target = $region5
    $region4: #{tpu_custom_call.1} parent=1 // pred_region
      %s11 = ssub.s32 128, 128
      %12 = vsyncadd [#allocation3], %s11
      %s14 = sshll.u32 [#allocation2], 4
      %s15 = int_to_ptr.vmem [resolvable:$true] %s14
      %17 = dma.hbm_to_vmem [thread:$0]  %s0, 128, %s15, [#allocation3]
    $region5: #{tpu_custom_call.1} parent=1 // pred_fallthru
      _
    // Predicated region
    $region6: #{tpu_custom_call.1} parent=1 // pred_check
      _
    $region7: #{tpu_custom_call.1} parent=1 // pred_check_branch
      %19 = sbr.rel (0) target = $region9
    $region8: #{tpu_custom_call.1} parent=1 // pred_region
      %20 = dma.done [#allocation3], 128
    $region9: #{tpu_custom_call.1} parent=1 // pred_fallthru
      _
    %v21 = vld [vmem:[#allocation2] sm:$0xff]
    %22 = vrot.lane.b32.xlu0 %v21, 1
    %v23 = vpop.permute.xlu0 %22
    %24 = vst [vmem:[#allocation5] sm:$0xff] %v23
    // Predicated region
    $region10: #{tpu_custom_call.1} parent=1 // pred_check
      _
    $region11: #{tpu_custom_call.1} parent=1 // pred_check_branch
      %26 = sbr.rel (0) target = $region13
    $region12: #{tpu_custom_call.1} parent=1 // pred_region
      %s28 = ssub.s32 128, 128
      %29 = vsyncadd [#allocation4], %s28
      %s31 = sshll.u32 [#allocation5], 4
      %s32 = int_to_ptr.vmem [resolvable:$true] %s31
      %34 = dma.vmem_to_hbm [thread:$0]  %s32, 128, %s1, [#allocation4]
    $region13: #{tpu_custom_call.1} parent=1 // pred_fallthru
      _
    // Predicated region
    $region14: #{tpu_custom_call.1} parent=1 // pred_check
      _
    $region15: #{tpu_custom_call.1} parent=1 // pred_check_branch
      %36 = sbr.rel (0) target = $region17
    $region16: #{tpu_custom_call.1} parent=1 // pred_region
      %37 = dma.done [#allocation4], 128
    $region17: #{tpu_custom_call.1} parent=1 // pred_fallthru
      _
    %38 = vsyncpa [#allocation3], 1
    %39 = vsyncpa [#allocation4], 1

</llo_original>
